<compile_context>
chip_gen: v7x
topology: tpu7x:2x2x1
jax: 0.10.0
libtpu: 0.0.40
codegen_flags: <defaults>
</compile_context>

<pallas_src>
import functools

import jax
import jax.numpy as jnp
from jax.experimental import pallas as pl
from jax.experimental.pallas import tpu as pltpu


def _round_up(n: int, m: int) -> int:
    return ((n + m - 1) // m) * m


def _mlp_kernel(x_ref, w1_ref, b1_ref, w2_ref, b2_ref, o_ref):
    # ---- linear1: [TB, Din_p] @ [Din_p, H_p] + [1, H_p]  (bf16 in, f32 accumulate) ----
    h = jnp.dot(x_ref[...], w1_ref[...], preferred_element_type=jnp.float32)
    h = h + b1_ref[...]
    # ---- act1: sigmoid; exp + approx reciprocal both go to the EUP slot ----
    h = pl.reciprocal(1.0 + jnp.exp(-h), approx=True)
    # ---- linear2: [TB, H_p] @ [H_p, Dout_p] + [1, Dout_p] ----
    y = jnp.dot(h.astype(jnp.bfloat16), w2_ref[...], preferred_element_type=jnp.float32)
    y = y + b2_ref[...]
    # ---- act2: LeakyReLU (PyTorch default negative_slope = 0.01) ----
    y = jnp.where(y > 0, y, 0.01 * y)
    o_ref[...] = y.astype(o_ref.dtype)


@functools.partial(jax.jit, static_argnames=("block_b",))
def simple_net_forward(x, w1, b1, w2, b2, block_b: int = 512):
    """Fused forward pass of SimpleNet.

    x  : [B, num_inputs]            float32
    w1 : [num_inputs, num_hidden]   float32   (PyTorch linear1.weight.T)
    b1 : [1, num_hidden]            float32
    w2 : [num_hidden, num_outputs]  float32   (PyTorch linear2.weight.T)
    b2 : [1, num_outputs]           float32
    returns [B, num_outputs]        float32
    """
    B, Din = x.shape
    H = w1.shape[1]
    Dout = w2.shape[1]

    # Lane-dense padding of the feature dims (zero padding is inert for the math:
    # padded W1 rows / W2 rows / output columns are all zero, so the valid slice of
    # the output is bit-identical in exact arithmetic).
    Din_p = _round_up(Din, 128)
    H_p = _round_up(H, 128)
    Dout_p = _round_up(Dout, 128)

    # Batch tile: multiple of 8 sublanes, capped so the pipeline fits comfortably in
    # VMEM even on v7x (64 MiB physical / 32 MiB scoped default).
    TB = min(block_b, _round_up(B, 8))
    B_p = _round_up(B, TB)

    bf16 = jnp.bfloat16
    x_p = jnp.zeros((B_p, Din_p), bf16).at[:B, :Din].set(x.astype(bf16))
    w1_p = jnp.zeros((Din_p, H_p), bf16).at[:Din, :H].set(w1.astype(bf16))
    b1_p = jnp.zeros((1, H_p), jnp.float32).at[:, :H].set(b1)
    w2_p = jnp.zeros((H_p, Dout_p), bf16).at[:H, :Dout].set(w2.astype(bf16))
    b2_p = jnp.zeros((1, Dout_p), jnp.float32).at[:, :Dout].set(b2)

    grid = (B_p // TB,)

    flops = 2 * B_p * (Din_p * H_p + H_p * Dout_p)
    bytes_accessed = (
        x_p.size * 2 + w1_p.size * 2 + w2_p.size * 2
        + b1_p.size * 4 + b2_p.size * 4 + B_p * Dout_p * 4
    )

    out_p = pl.pallas_call(
        _mlp_kernel,
        out_shape=jax.ShapeDtypeStruct((B_p, Dout_p), jnp.float32),
        grid=grid,
        in_specs=[
            pl.BlockSpec((TB, Din_p), lambda i: (i, 0)),      # x: streamed per batch tile
            pl.BlockSpec((Din_p, H_p), lambda i: (0, 0)),     # W1: resident
            pl.BlockSpec((1, H_p), lambda i: (0, 0)),         # b1: resident
            pl.BlockSpec((H_p, Dout_p), lambda i: (0, 0)),    # W2: resident
            pl.BlockSpec((1, Dout_p), lambda i: (0, 0)),      # b2: resident
        ],
        out_specs=pl.BlockSpec((TB, Dout_p), lambda i: (i, 0)),
        compiler_params=pltpu.CompilerParams(
            dimension_semantics=("parallel",),
            vmem_limit_bytes=32 * 1024 * 1024,
        ),
        cost_estimate=pl.CostEstimate(
            flops=flops,
            transcendentals=B_p * H_p,
            bytes_accessed=bytes_accessed,
        ),
    )(x_p, w1_p, b1_p, w2_p, b2_p)

    return out_p[:B, :Dout]


def init_params(key, num_inputs, num_outputs, num_hidden):
    """Deterministic init mimicking nn.Linear's uniform(-1/sqrt(fan_in), 1/sqrt(fan_in))."""
    k1, k2, k3, k4 = jax.random.split(key, 4)
    bound1 = 1.0 / (num_inputs ** 0.5)
    bound2 = 1.0 / (num_hidden ** 0.5)
    w1 = jax.random.uniform(k1, (num_inputs, num_hidden), jnp.float32, -bound1, bound1)
    b1 = jax.random.uniform(k2, (1, num_hidden), jnp.float32, -bound1, bound1)
    w2 = jax.random.uniform(k3, (num_hidden, num_outputs), jnp.float32, -bound2, bound2)
    b2 = jax.random.uniform(k4, (1, num_outputs), jnp.float32, -bound2, bound2)
    return w1, b1, w2, b2


def reference_forward(x, w1, b1, w2, b2):
    h = jax.nn.sigmoid(x @ w1 + b1)
    out = h @ w2 + b2
    return jnp.where(out > 0, out, 0.01 * out)


if __name__ == "__main__":
    # NOTE: at these toy sizes the fixed pallas_call overhead dominates; the kernel is
    # built to pay off once the batch grid streams many tiles (large B).
    num_inputs, num_hidden, num_outputs = 16, 32, 8
    batch = 8

    key = jax.random.PRNGKey(0)
    kx, kp = jax.random.split(key)
    x = jax.random.normal(kx, (batch, num_inputs), jnp.float32)
    w1, b1, w2, b2 = init_params(kp, num_inputs, num_outputs, num_hidden)

    out = simple_net_forward(x, w1, b1, w2, b2)
    out = jax.block_until_ready(out)

    ref = reference_forward(x, w1, b1, w2, b2)
    assert out.shape == (batch, num_outputs)
    # bf16 MXU inputs + approx reciprocal -> tolerance loosened vs. pure-f32 reference.
    assert jnp.allclose(out, ref, atol=5e-2, rtol=5e-2)

    print("KERNEL_OK")
</pallas_src>

<mosaic_0001>
module attributes {stable_mosaic.version = 11 : i64} {
  func.func @_mlp_kernel(%arg0: i32, %arg1: memref<8x128xbf16, #tpu.memory_space<vmem>>, %arg2: memref<128x128xbf16, #tpu.memory_space<vmem>>, %arg3: memref<1x128xf32, #tpu.memory_space<vmem>>, %arg4: memref<128x128xbf16, #tpu.memory_space<vmem>>, %arg5: memref<1x128xf32, #tpu.memory_space<vmem>>, %arg6: memref<8x128xf32, #tpu.memory_space<vmem>>) attributes {dimension_semantics = [#tpu.dimension_semantics<parallel>], iteration_bounds = array<i64: 1>, scalar_prefetch = 0 : i64, scratch_operands = 0 : i64, tpu.core_type = #tpu.core_type<tc>, window_params = [{transform_indices = @transform_0, window_bounds = array<i64: 8, 128>}, {pipeline_mode = #tpu.pipeline_mode<synchronous>, transform_indices = @transform_1, window_bounds = array<i64: 128, 128>}, {pipeline_mode = #tpu.pipeline_mode<synchronous>, transform_indices = @transform_2, window_bounds = array<i64: 1, 128>}, {pipeline_mode = #tpu.pipeline_mode<synchronous>, transform_indices = @transform_3, window_bounds = array<i64: 128, 128>}, {pipeline_mode = #tpu.pipeline_mode<synchronous>, transform_indices = @transform_4, window_bounds = array<i64: 1, 128>}, {transform_indices = @transform_5, window_bounds = array<i64: 8, 128>}]} {
    %c0 = arith.constant 0 : index
    %c0_0 = arith.constant 0 : index
    %0 = vector.load %arg1[%c0, %c0_0] : memref<8x128xbf16, #tpu.memory_space<vmem>>, vector<8x128xbf16>
    %c0_1 = arith.constant 0 : index
    %c0_2 = arith.constant 0 : index
    %1 = vector.load %arg2[%c0_1, %c0_2] : memref<128x128xbf16, #tpu.memory_space<vmem>>, vector<128x128xbf16>
    %cst = arith.constant dense<0.000000e+00> : vector<8x128xf32>
    %2 = tpu.matmul %0, %1, %cst {dimension_numbers = #tpu.dot_dimension_numbers<[1], [0], [0], [1], [0, 0, 1, 1], [], []>} : vector<8x128xbf16>, vector<128x128xbf16>, vector<8x128xf32> -> vector<8x128xf32>
    %c0_3 = arith.constant 0 : index
    %c0_4 = arith.constant 0 : index
    %3 = vector.load %arg3[%c0_3, %c0_4] : memref<1x128xf32, #tpu.memory_space<vmem>>, vector<1x128xf32>
    %4 = vector.broadcast %3 : vector<1x128xf32> to vector<8x128xf32>
    %5 = arith.addf %2, %4 : vector<8x128xf32>
    %cst_5 = arith.constant 0.000000e+00 : f32
    %6 = vector.broadcast %cst_5 : f32 to vector<8x128xf32>
    %7 = arith.subf %6, %5 : vector<8x128xf32>
    %8 = math.exp %7 : vector<8x128xf32>
    %cst_6 = arith.constant 1.000000e+00 : f32
    %9 = vector.broadcast %cst_6 : f32 to vector<8x128xf32>
    %10 = arith.addf %9, %8 : vector<8x128xf32>
    %11 = tpu.reciprocal %10 {approx = true} : vector<8x128xf32> -> vector<8x128xf32>
    %12 = arith.truncf %11 : vector<8x128xf32> to vector<8x128xbf16>
    %c0_7 = arith.constant 0 : index
    %c0_8 = arith.constant 0 : index
    %13 = vector.load %arg4[%c0_7, %c0_8] : memref<128x128xbf16, #tpu.memory_space<vmem>>, vector<128x128xbf16>
    %cst_9 = arith.constant dense<0.000000e+00> : vector<8x128xf32>
    %14 = tpu.matmul %12, %13, %cst_9 {dimension_numbers = #tpu.dot_dimension_numbers<[1], [0], [0], [1], [0, 0, 1, 1], [], []>} : vector<8x128xbf16>, vector<128x128xbf16>, vector<8x128xf32> -> vector<8x128xf32>
    %c0_10 = arith.constant 0 : index
    %c0_11 = arith.constant 0 : index
    %15 = vector.load %arg5[%c0_10, %c0_11] : memref<1x128xf32, #tpu.memory_space<vmem>>, vector<1x128xf32>
    %16 = vector.broadcast %15 : vector<1x128xf32> to vector<8x128xf32>
    %17 = arith.addf %14, %16 : vector<8x128xf32>
    %cst_12 = arith.constant 0.000000e+00 : f32
    %18 = vector.broadcast %cst_12 : f32 to vector<8x128xf32>
    %19 = arith.cmpf ogt, %17, %18 : vector<8x128xf32>
    %cst_13 = arith.constant 0.00999999977 : f32
    %20 = vector.broadcast %cst_13 : f32 to vector<8x128xf32>
    %21 = arith.mulf %20, %17 : vector<8x128xf32>
    %22 = arith.select %19, %17, %21 : vector<8x128xi1>, vector<8x128xf32>
    %c0_14 = arith.constant 0 : index
    %c0_15 = arith.constant 0 : index
    %23 = vector.load %arg6[%c0_14, %c0_15] : memref<8x128xf32, #tpu.memory_space<vmem>>, vector<8x128xf32>
    tpu.vector_store %arg6[%c0_14, %c0_15], %22 {strides = array<i32>} : memref<8x128xf32, #tpu.memory_space<vmem>>, vector<8x128xf32>,
    return
  }
  func.func @transform_0(%arg0: i32) -> (i32, i32) {
    %c0_i32 = arith.constant 0 : i32
    %c0_i32_0 = arith.constant 0 : i32
    return %arg0, %c0_i32 : i32, i32
  }
  func.func @transform_1(%arg0: i32) -> (i32, i32) {
    %c0_i32 = arith.constant 0 : i32
    %c0_i32_0 = arith.constant 0 : i32
    %c0_i32_1 = arith.constant 0 : i32
    return %c0_i32, %c0_i32_0 : i32, i32
  }
  func.func @transform_2(%arg0: i32) -> (i32, i32) {
    %c0_i32 = arith.constant 0 : i32
    %c0_i32_0 = arith.constant 0 : i32
    %c0_i32_1 = arith.constant 0 : i32
    return %c0_i32, %c0_i32_0 : i32, i32
  }
  func.func @transform_3(%arg0: i32) -> (i32, i32) {
    %c0_i32 = arith.constant 0 : i32
    %c0_i32_0 = arith.constant 0 : i32
    %c0_i32_1 = arith.constant 0 : i32
    return %c0_i32, %c0_i32_0 : i32, i32
  }
  func.func @transform_4(%arg0: i32) -> (i32, i32) {
    %c0_i32 = arith.constant 0 : i32
    %c0_i32_0 = arith.constant 0 : i32
    %c0_i32_1 = arith.constant 0 : i32
    return %c0_i32, %c0_i32_0 : i32, i32
  }
  func.func @transform_5(%arg0: i32) -> (i32, i32) {
    %c0_i32 = arith.constant 0 : i32
    %c0_i32_0 = arith.constant 0 : i32
    return %arg0, %c0_i32 : i32, i32
  }
}

</mosaic_0001>

<llo_original>
// kernel: simple_net_forward.1
$region0: #{simple_net_forward.1}
  #allocation0 [shape = 'u32[]', space=smem, size = 0x4, offset = 0x4, fixed_abs, tag = 'smem constant byte address 0x4 - core index']
  #allocation1 [shape = 'u32[144,128]{1,0:T(1,128)}', space=vmem, size = 0x12000, scoped, tag = 'internal scratch']
  %s0 = inlined_call_operand.vmem [shape: bf16[8,128], index: 0, kind: input, shape index: {}]
  %s1 = inlined_call_operand.vmem [shape: bf16[128,128], index: 1, kind: input, shape index: {}]
  %s2 = inlined_call_operand.vmem [shape: f32[1,128], index: 2, kind: input, shape index: {}]
  %s3 = inlined_call_operand.vmem [shape: bf16[128,128], index: 3, kind: input, shape index: {}]
  %s4 = inlined_call_operand.vmem [shape: f32[1,128], index: 4, kind: input, shape index: {}]
  %s5 = inlined_call_operand.hbm [shape: f32[8,128], index: 5, kind: output, shape index: {}]
  %s6 = sld [smem:[#allocation0]]
  $region30: #{simple_net_forward.1} parent=0
    _
  %s8 = ssub.s32 1, %s6
  %s9 = scalar_select 0, %s8, %s6
  $region1: #{simple_net_forward.1} parent=0
    #allocation2 [shape = 'u8[4096]{0}', space=vmem, size = 0x1000, scoped, tag = 'output window, operand 0, single buffered']
    #allocation3 [shape = 's32[1]{0}', space=sflag, size = 0x4, scoped, tag = 'scoped memory for simple_net_forward.1']
    %10 = vsyncpa [#allocation3], 0
    // Predicated region
    $region2: #{simple_net_forward.1} parent=1 // pred_check
      _
    $region3: #{simple_net_forward.1} parent=1 // pred_check_branch
      %12 = sbr.rel (0) target = $region5
    $region4: #{simple_net_forward.1} parent=1 // pred_region
      _
    $region5: #{simple_net_forward.1} parent=1 // pred_fallthru
      _
    // Predicated region
    $region6: #{simple_net_forward.1} parent=1 // pred_check
      _
    $region7: #{simple_net_forward.1} parent=1 // pred_check_branch
      %14 = sbr.rel (0) target = $region9
    $region8: #{simple_net_forward.1} parent=1 // pred_region
      _
    $region9: #{simple_net_forward.1} parent=1 // pred_fallthru
      _
    // Predicated region
    $region10: #{simple_net_forward.1} parent=1 // pred_check
      _
    $region11: #{simple_net_forward.1} parent=1 // pred_check_branch
      %16 = sbr.rel (0) target = $region13
    $region12: #{simple_net_forward.1} parent=1 // pred_region
      _
    $region13: #{simple_net_forward.1} parent=1 // pred_fallthru
      _
    // Predicated region
    $region14: #{simple_net_forward.1} parent=1 // pred_check
      _
    $region15: #{simple_net_forward.1} parent=1 // pred_check_branch
      %18 = sbr.rel (0) target = $region17
    $region16: #{simple_net_forward.1} parent=1 // pred_region
      _
    $region17: #{simple_net_forward.1} parent=1 // pred_fallthru
      _
    // Predicated region
    $region18: #{simple_net_forward.1} parent=1 // pred_check
      _
    $region19: #{simple_net_forward.1} parent=1 // pred_check_branch
      %20 = sbr.rel (0) target = $region21
    $region20: #{simple_net_forward.1} parent=1 // pred_region
      _
    $region21: #{simple_net_forward.1} parent=1 // pred_fallthru
      _
    %v22 = vld [vmem:[%s0] sm:$0xf]
    %v23 = vld [vmem:[%s1] sm:$0xf]
    %v24 = vld [vmem:[%s1 + $0x4] sm:$0xf]
    %v25 = vld [vmem:[%s1 + $0x8] sm:$0xf]
    %v26 = vld [vmem:[%s1 + $0xc] sm:$0xf]
    %v27 = vld [vmem:[%s1 + $0x10] sm:$0xf]
    %v28 = vld [vmem:[%s1 + $0x14] sm:$0xf]
    %v29 = vld [vmem:[%s1 + $0x18] sm:$0xf]
    %v30 = vld [vmem:[%s1 + $0x1c] sm:$0xf]
    %v31 = vld [vmem:[%s1 + $0x20] sm:$0xf]
    %v32 = vld [vmem:[%s1 + $0x24] sm:$0xf]
    %v33 = vld [vmem:[%s1 + $0x28] sm:$0xf]
    %v34 = vld [vmem:[%s1 + $0x2c] sm:$0xf]
    %v35 = vld [vmem:[%s1 + $0x30] sm:$0xf]
    %v36 = vld [vmem:[%s1 + $0x34] sm:$0xf]
    %v37 = vld [vmem:[%s1 + $0x38] sm:$0xf]
    %v38 = vld [vmem:[%s1 + $0x3c] sm:$0xf]
    %v39 = vld [vmem:[%s2] sm:$0x1]
    %v41 = vlaneseq
    %v42 = vshrl.u32 %v41, 7
    %v43 = vsub.s32 0, %v42
    %v44 = vrot.slane %v39, %v43
    %v62 = vunpack.c.l.b16 %v23
    %v63 = vunpack.c.l.b16 %v24
    %v64 = vunpack.c.l.b16 %v25
    %v65 = vunpack.c.l.b16 %v26
    %v66 = vunpack.c.l.b16 %v27
    %v67 = vunpack.c.l.b16 %v28
    %v68 = vunpack.c.l.b16 %v29
    %v69 = vunpack.c.l.b16 %v30
    %v70 = vunpack.c.l.b16 %v31
    %v71 = vunpack.c.l.b16 %v32
    %v72 = vunpack.c.l.b16 %v33
    %v73 = vunpack.c.l.b16 %v34
    %v74 = vunpack.c.l.b16 %v35
    %v75 = vunpack.c.l.b16 %v36
    %v76 = vunpack.c.l.b16 %v37
    %v77 = vunpack.c.l.b16 %v38
    %v78 = vpack.c.b16 %v63, %v62
    %v79 = vpack.c.b16 %v65, %v64
    %v80 = vpack.c.b16 %v67, %v66
    %v81 = vpack.c.b16 %v69, %v68
    %v82 = vpack.c.b16 %v71, %v70
    %v83 = vpack.c.b16 %v73, %v72
    %v84 = vpack.c.b16 %v75, %v74
    %v85 = vpack.c.b16 %v77, %v76
    %94 = vmatprep.subr.bf16.mxu0 0
    %95 = vmatpush1.bf16.msra.mxu0 %v78
    %96 = vmatprep.subr.bf16.mxu0 0
    %97 = vmatpush1.bf16.msra.mxu0 %v79
    %98 = vmatprep.subr.bf16.mxu0 0
    %99 = vmatpush1.bf16.msra.mxu0 %v80
    %100 = vmatprep.subr.bf16.mxu0 0
    %101 = vmatpush1.bf16.msra.mxu0 %v81
    %102 = vmatprep.subr.bf16.mxu0 0
    %103 = vmatpush1.bf16.msra.mxu0 %v82
    %104 = vmatprep.subr.bf16.mxu0 0
    %105 = vmatpush1.bf16.msra.mxu0 %v83
    %106 = vmatprep.subr.bf16.mxu0 0
    %107 = vmatpush1.bf16.msra.mxu0 %v84
    %108 = vmatprep.subr.bf16.mxu0 0
    %109 = vmatpush1.bf16.msra.mxu0 %v85
    %110 = vmatprep.subr.bf16.mxu0 0
    %111 = vmatpush1.bf16.msra.mxu0 0
    %112 = vmatprep.subr.bf16.mxu0 0
    %113 = vmatpush1.bf16.msra.mxu0 0
    %114 = vmatprep.subr.bf16.mxu0 0
    %115 = vmatpush1.bf16.msra.mxu0 0
    %116 = vmatprep.subr.bf16.mxu0 0
    %117 = vmatpush1.bf16.msra.mxu0 0
    %118 = vmatprep.subr.bf16.mxu0 0
    %119 = vmatpush1.bf16.msra.mxu0 0
    %120 = vmatprep.subr.bf16.mxu0 0
    %121 = vmatpush1.bf16.msra.mxu0 0
    %122 = vmatprep.subr.bf16.mxu0 0
    %123 = vmatpush1.bf16.msra.mxu0 0
    %124 = vmatprep.subr.bf16.mxu0 0
    %125 = vmatpush1.bf16.msra.mxu0 0
    %126 = vmatprep.mubr.bf16.mxu0 0
    %127 = vmatmul.mubr.bf16.gmra.mrb[0].mxu0 %v22
    %v128 = vpop.f32.mrb[0].mxu0
    %v129 = vadd.f32 %v44, %v128
    %v130 = vpop.f32.mrb[0].mxu0
    %v131 = vpop.f32.mrb[0].mxu0
    %v132 = vpop.f32.mrb[0].mxu0
    %133 = vdwg.mxu0
    %v134 = vsub.f32 0.0, %v129
    %v135 = vmul.f32 %v134, 1.442695
    %v136 = vpow.pop %v135
    %v137 = vadd.f32 %v136, 1.0
    %v138 = vrcp.pop %v137
    %v139 = vpack.c.bf16 %v138, %v138
    %v140 = vld [vmem:[%s3] sm:$0xf]
    %v141 = vld [vmem:[%s3 + $0x4] sm:$0xf]
    %v142 = vld [vmem:[%s3 + $0x8] sm:$0xf]
    %v143 = vld [vmem:[%s3 + $0xc] sm:$0xf]
    %v144 = vld [vmem:[%s3 + $0x10] sm:$0xf]
    %v145 = vld [vmem:[%s3 + $0x14] sm:$0xf]
    %v146 = vld [vmem:[%s3 + $0x18] sm:$0xf]
    %v147 = vld [vmem:[%s3 + $0x1c] sm:$0xf]
    %v148 = vld [vmem:[%s3 + $0x20] sm:$0xf]
    %v149 = vld [vmem:[%s3 + $0x24] sm:$0xf]
    %v150 = vld [vmem:[%s3 + $0x28] sm:$0xf]
    %v151 = vld [vmem:[%s3 + $0x2c] sm:$0xf]
    %v152 = vld [vmem:[%s3 + $0x30] sm:$0xf]
    %v153 = vld [vmem:[%s3 + $0x34] sm:$0xf]
    %v154 = vld [vmem:[%s3 + $0x38] sm:$0xf]
    %v155 = vld [vmem:[%s3 + $0x3c] sm:$0xf]
    %v156 = vld [vmem:[%s4] sm:$0x1]
    %v158 = vlaneseq
    %v159 = vshrl.u32 %v158, 7
    %v160 = vsub.s32 0, %v159
    %v161 = vrot.slane %v156, %v160
    %v179 = vunpack.c.l.b16 %v140
    %v180 = vunpack.c.l.b16 %v141
    %v181 = vunpack.c.l.b16 %v142
    %v182 = vunpack.c.l.b16 %v143
    %v183 = vunpack.c.l.b16 %v144
    %v184 = vunpack.c.l.b16 %v145
    %v185 = vunpack.c.l.b16 %v146
    %v186 = vunpack.c.l.b16 %v147
    %v187 = vunpack.c.l.b16 %v148
    %v188 = vunpack.c.l.b16 %v149
    %v189 = vunpack.c.l.b16 %v150
    %v190 = vunpack.c.l.b16 %v151
    %v191 = vunpack.c.l.b16 %v152
    %v192 = vunpack.c.l.b16 %v153
    %v193 = vunpack.c.l.b16 %v154
    %v194 = vunpack.c.l.b16 %v155
    %v195 = vpack.c.b16 %v180, %v179
    %v196 = vpack.c.b16 %v182, %v181
    %v197 = vpack.c.b16 %v184, %v183
    %v198 = vpack.c.b16 %v186, %v185
    %v199 = vpack.c.b16 %v188, %v187
    %v200 = vpack.c.b16 %v190, %v189
    %v201 = vpack.c.b16 %v192, %v191
    %v202 = vpack.c.b16 %v194, %v193
    %211 = vmatprep.subr.bf16.mxu0 0
    %212 = vmatpush1.bf16.msra.mxu0 %v195
    %213 = vmatprep.subr.bf16.mxu0 0
    %214 = vmatpush1.bf16.msra.mxu0 %v196
    %215 = vmatprep.subr.bf16.mxu0 0
    %216 = vmatpush1.bf16.msra.mxu0 %v197
    %217 = vmatprep.subr.bf16.mxu0 0
    %218 = vmatpush1.bf16.msra.mxu0 %v198
    %219 = vmatprep.subr.bf16.mxu0 0
    %220 = vmatpush1.bf16.msra.mxu0 %v199
    %221 = vmatprep.subr.bf16.mxu0 0
    %222 = vmatpush1.bf16.msra.mxu0 %v200
    %223 = vmatprep.subr.bf16.mxu0 0
    %224 = vmatpush1.bf16.msra.mxu0 %v201
    %225 = vmatprep.subr.bf16.mxu0 0
    %226 = vmatpush1.bf16.msra.mxu0 %v202
    %227 = vmatprep.subr.bf16.mxu0 0
    %228 = vmatpush1.bf16.msra.mxu0 0
    %229 = vmatprep.subr.bf16.mxu0 0
    %230 = vmatpush1.bf16.msra.mxu0 0
    %231 = vmatprep.subr.bf16.mxu0 0
    %232 = vmatpush1.bf16.msra.mxu0 0
    %233 = vmatprep.subr.bf16.mxu0 0
    %234 = vmatpush1.bf16.msra.mxu0 0
    %235 = vmatprep.subr.bf16.mxu0 0
    %236 = vmatpush1.bf16.msra.mxu0 0
    %237 = vmatprep.subr.bf16.mxu0 0
    %238 = vmatpush1.bf16.msra.mxu0 0
    %239 = vmatprep.subr.bf16.mxu0 0
    %240 = vmatpush1.bf16.msra.mxu0 0
    %241 = vmatprep.subr.bf16.mxu0 0
    %242 = vmatpush1.bf16.msra.mxu0 0
    %243 = vmatprep.mubr.bf16.mxu0 0
    %244 = vmatmul.mubr.bf16.gmra.mrb[0].mxu0 %v139
    %v245 = vpop.f32.mrb[0].mxu0
    %v246 = vadd.f32 %v161, %v245
    %v247 = vpop.f32.mrb[0].mxu0
    %v248 = vpop.f32.mrb[0].mxu0
    %v249 = vpop.f32.mrb[0].mxu0
    %250 = vdwg.mxu0
    %vm251 = vcmp.gt.f32.partialorder %v246, 0.0
    %v252 = vmul.f32 %v246, 0.01
    %v253 = vsel %vm251, %v246, %v252
    %254 = vst [vmem:[#allocation2] sm:$0xff] %v253
    // Predicated region
    $region22: #{simple_net_forward.1} parent=1 // pred_check
      _
    $region23: #{simple_net_forward.1} parent=1 // pred_check_branch
      %256 = sbr.rel (0) target = $region25
    $region24: #{simple_net_forward.1} parent=1 // pred_region
      %s258 = ssub.s32 128, 128
      %259 = vsyncadd [#allocation3], %s258
      %s261 = sshll.u32 [#allocation2], 4
      %s262 = int_to_ptr.vmem [resolvable:$true] %s261
      %264 = dma.vmem_to_hbm [thread:$0]  %s262, 128, %s5, [#allocation3]
    $region25: #{simple_net_forward.1} parent=1 // pred_fallthru
      _
    // Predicated region
    $region26: #{simple_net_forward.1} parent=1 // pred_check
      _
    $region27: #{simple_net_forward.1} parent=1 // pred_check_branch
      %266 = sbr.rel (0) target = $region29
    $region28: #{simple_net_forward.1} parent=1 // pred_region
      %267 = dma.done [#allocation3], 128
    $region29: #{simple_net_forward.1} parent=1 // pred_fallthru
      _
    %268 = vsyncpa [#allocation3], 1

</llo_original>
